<compile_context>
chip_gen: v6e
topology: v6e:2x2x1
jax: 0.10.0
libtpu: 0.0.40
codegen_flags: <defaults>
</compile_context>

<pallas_src>
import functools

import jax
import jax.numpy as jnp
from jax.experimental import pallas as pl
from jax.experimental.pallas import tpu as pltpu


def focal_loss_kernel(logits_ref, tgt_ref, out_ref, *,
                      alpha, gamma, background_class, ignore_index,
                      n_valid, tile_n):
    i = pl.program_id(0)

    x = logits_ref[...].astype(jnp.float32)          # (C, TN) lane-dense
    t = tgt_ref[...]                                 # (1, TN) int32

    # Numerically stable log-softmax / cross-entropy over the class (sublane)
    # axis; each example is an independent lane, so the tail-garbage lanes of
    # an overhanging last tile never contaminate valid lanes.
    m = jnp.max(x, axis=0, keepdims=True)                                 # (1, TN)
    lse = jnp.log(jnp.sum(jnp.exp(x - m), axis=0, keepdims=True)) + m     # (1, TN)
    cls = jax.lax.broadcasted_iota(jnp.int32, x.shape, 0)                 # (C, TN)
    logit_t = jnp.sum(jnp.where(cls == t, x, 0.0), axis=0, keepdims=True)
    ce = lse - logit_t                                                    # (1, TN)

    pt = jnp.exp(-ce)                      # EUP
    omp = 1.0 - pt
    g = float(gamma)
    if g == 2.0:                           # common/default case: pure VPU muls
        mod = omp * omp
    elif g == int(g) and g >= 0.0:
        mod = jnp.ones_like(omp)
        for _ in range(int(g)):
            mod = mod * omp
    else:                                  # non-integer gamma: transcendental pow
        mod = omp ** g

    alpha_w = jnp.where(t == background_class,
                        jnp.float32(alpha), jnp.float32(1.0 - alpha))
    f_loss = alpha_w * mod * ce                                           # (1, TN)

    # Valid rows: not ignore_index AND inside the real (unpadded) N.
    col = i * tile_n + jax.lax.broadcasted_iota(jnp.int32, t.shape, 1)
    valid = jnp.logical_and(t != ignore_index, col < n_valid)

    # jnp.where (select) — not multiply — so NaN/garbage in masked lanes is dropped.
    loss_part = jnp.sum(jnp.where(valid, f_loss, jnp.float32(0.0)))
    cnt_part = jnp.sum(jnp.where(valid, jnp.float32(1.0), jnp.float32(0.0)))

    # Lane-dense per-tile partial output: lane 0 = loss sum, lane 1 = count.
    lane = jax.lax.broadcasted_iota(jnp.int32, (1, 128), 1)
    out_ref[...] = jnp.where(lane == 0, loss_part,
                             jnp.where(lane == 1, cnt_part, jnp.float32(0.0)))


def focal_loss(logits, targets, *, background_class, alpha=0.25, gamma=2,
               ignore_index=-1, reduce=True, tile_n=None):
    """Pallas TPU focal loss (mean). logits: (N, C) float, targets: (N,) int."""
    assert reduce, "only reduce=True (mean) is supported by this kernel"
    n, c = logits.shape
    itemsize = jnp.dtype(logits.dtype).itemsize

    # Tile over examples (lane axis). Budget ~2 MiB per logits block so the
    # ~0.35 us per-grid-step overhead is amortised, while double-buffered
    # inputs + f32 temporaries stay well under the 32 MiB scoped VMEM limit.
    if tile_n is None:
        budget = 2 * 1024 * 1024
        tile_n = max(128, (budget // max(c * itemsize, 1)) // 128 * 128)
    else:
        tile_n = max(128, (int(tile_n) // 128) * 128)
    tile_n = min(tile_n, pl.cdiv(n, 128) * 128)     # don't over-allocate past N
    num_tiles = pl.cdiv(n, tile_n)

    # Lane-dense layouts: classes on sublanes, examples on lanes.
    logits_t = logits.T                               # (C, N), native dtype
    targets2d = targets.reshape(1, n).astype(jnp.int32)

    kernel = functools.partial(
        focal_loss_kernel, alpha=float(alpha), gamma=gamma,
        background_class=int(background_class), ignore_index=int(ignore_index),
        n_valid=int(n), tile_n=int(tile_n))

    parts = pl.pallas_call(
        kernel,
        out_shape=jax.ShapeDtypeStruct((num_tiles, 128), jnp.float32),
        grid_spec=pltpu.PrefetchScalarGridSpec(
            num_scalar_prefetch=0,
            grid=(num_tiles,),
            in_specs=[
                pl.BlockSpec((c, tile_n), lambda i: (0, i)),
                pl.BlockSpec((1, tile_n), lambda i: (0, i)),
            ],
            out_specs=pl.BlockSpec((1, 128), lambda i: (i, 0)),
        ),
        compiler_params=pltpu.CompilerParams(
            dimension_semantics=("parallel",),
            vmem_limit_bytes=32 * 1024 * 1024),
    )(logits_t, targets2d)

    loss_sum = jnp.sum(parts[:, 0])
    valid_cnt = jnp.sum(parts[:, 1])
    # NOTE: if every target == ignore_index this yields nan, matching
    # torch.mean over an empty (fully filtered) tensor.
    return loss_sum / valid_cnt


def _reference_focal_loss(logits, targets, *, background_class, alpha=0.25,
                          gamma=2, ignore_index=-1):
    """Pure-JAX reference mirroring the PyTorch module (reduce=True)."""
    logp = jax.nn.log_softmax(logits.astype(jnp.float32), axis=-1)
    safe_t = jnp.where(targets == ignore_index, 0, targets)
    ce = -jnp.take_along_axis(logp, safe_t[:, None], axis=-1)[:, 0]
    pt = jnp.exp(-ce)
    aw = jnp.where(targets == background_class, alpha, 1.0 - alpha)
    fl = aw * (1.0 - pt) ** gamma * ce
    valid = (targets != ignore_index).astype(jnp.float32)
    return jnp.sum(fl * valid) / jnp.sum(valid)


if __name__ == "__main__":
    key = jax.random.PRNGKey(0)
    k_logits, k_tgt = jax.random.split(key)

    N, C = 300, 8
    BACKGROUND_CLASS = 0

    logits = jax.random.normal(k_logits, (N, C), dtype=jnp.float32)
    # targets in [-1, C): -1 entries exercise ignore_index filtering
    targets = jax.random.randint(k_tgt, (N,), -1, C, dtype=jnp.int32)

    out = focal_loss(logits, targets, background_class=BACKGROUND_CLASS,
                     alpha=0.25, gamma=2, ignore_index=-1, reduce=True)
    out = jax.block_until_ready(out)

    ref = _reference_focal_loss(logits, targets,
                                background_class=BACKGROUND_CLASS,
                                alpha=0.25, gamma=2, ignore_index=-1)
    assert jnp.allclose(out, ref, rtol=1e-5, atol=1e-6), (out, ref)

    print("KERNEL_OK")
</pallas_src>

<mosaic_0001>
module attributes {stable_mosaic.version = 11 : i64} {
  func.func @focal_loss_kernel(%arg0: i32, %arg1: memref<8x384xf32, #tpu.memory_space<vmem>>, %arg2: memref<1x384xi32, #tpu.memory_space<vmem>>, %arg3: memref<1x128xf32, #tpu.memory_space<vmem>>) attributes {dimension_semantics = [#tpu.dimension_semantics<parallel>], iteration_bounds = array<i64: 1>, scalar_prefetch = 0 : i64, scratch_operands = 0 : i64, tpu.core_type = #tpu.core_type<tc>, window_params = [{transform_indices = @transform_0, window_bounds = array<i64: 8, 384>}, {transform_indices = @transform_1, window_bounds = array<i64: 1, 384>}, {transform_indices = @transform_2, window_bounds = array<i64: 1, 128>}]} {
    %c0 = arith.constant 0 : index
    %c0_0 = arith.constant 0 : index
    %0 = vector.load %arg1[%c0, %c0_0] : memref<8x384xf32, #tpu.memory_space<vmem>>, vector<8x384xf32>
    %c0_1 = arith.constant 0 : index
    %c0_2 = arith.constant 0 : index
    %1 = vector.load %arg2[%c0_1, %c0_2] : memref<1x384xi32, #tpu.memory_space<vmem>>, vector<1x384xi32>
    %cst = arith.constant dense<0xFF800000> : vector<384xf32>
    %2 = vector.multi_reduction <maximumf>, %0, %cst [0] : vector<8x384xf32> to vector<384xf32>
    %3 = vector.shape_cast %2 : vector<384xf32> to vector<1x384xf32>
    %4 = vector.broadcast %3 : vector<1x384xf32> to vector<8x384xf32>
    %5 = arith.subf %0, %4 : vector<8x384xf32>
    %6 = math.exp %5 : vector<8x384xf32>
    %cst_3 = arith.constant dense<0.000000e+00> : vector<384xf32>
    %7 = vector.multi_reduction <add>, %6, %cst_3 [0] : vector<8x384xf32> to vector<384xf32>
    %8 = vector.shape_cast %7 : vector<384xf32> to vector<1x384xf32>
    %9 = math.log %8 : vector<1x384xf32>
    %10 = arith.addf %9, %3 : vector<1x384xf32>
    %11 = tpu.iota {dimensions = array<i32: 0>} : vector<8x384xi32>
    %12 = vector.broadcast %1 : vector<1x384xi32> to vector<8x384xi32>
    %13 = arith.cmpi eq, %11, %12 : vector<8x384xi32>
    %cst_4 = arith.constant 0.000000e+00 : f32
    %14 = vector.broadcast %cst_4 : f32 to vector<8x384xf32>
    %15 = arith.select %13, %0, %14 : vector<8x384xi1>, vector<8x384xf32>
    %cst_5 = arith.constant dense<0.000000e+00> : vector<384xf32>
    %16 = vector.multi_reduction <add>, %15, %cst_5 [0] : vector<8x384xf32> to vector<384xf32>
    %17 = vector.shape_cast %16 : vector<384xf32> to vector<1x384xf32>
    %18 = arith.subf %10, %17 : vector<1x384xf32>
    %cst_6 = arith.constant 0.000000e+00 : f32
    %19 = vector.broadcast %cst_6 : f32 to vector<1x384xf32>
    %20 = arith.subf %19, %18 : vector<1x384xf32>
    %21 = math.exp %20 : vector<1x384xf32>
    %cst_7 = arith.constant 1.000000e+00 : f32
    %22 = vector.broadcast %cst_7 : f32 to vector<1x384xf32>
    %23 = arith.subf %22, %21 : vector<1x384xf32>
    %24 = arith.mulf %23, %23 : vector<1x384xf32>
    %c0_i32 = arith.constant 0 : i32
    %25 = vector.broadcast %c0_i32 : i32 to vector<1x384xi32>
    %26 = arith.cmpi eq, %1, %25 : vector<1x384xi32>
    %cst_8 = arith.constant 2.500000e-01 : f32
    %cst_9 = arith.constant 7.500000e-01 : f32
    %27 = vector.broadcast %cst_8 : f32 to vector<1x384xf32>
    %28 = vector.broadcast %cst_9 : f32 to vector<1x384xf32>
    %29 = arith.select %26, %27, %28 : vector<1x384xi1>, vector<1x384xf32>
    %30 = arith.mulf %29, %24 : vector<1x384xf32>
    %31 = arith.mulf %30, %18 : vector<1x384xf32>
    %c384_i32 = arith.constant 384 : i32
    %32 = arith.muli %arg0, %c384_i32 : i32
    %33 = tpu.iota {dimensions = array<i32: 1>} : vector<1x384xi32>
    %34 = vector.broadcast %32 : i32 to vector<1x384xi32>
    %35 = arith.addi %34, %33 : vector<1x384xi32>
    %c-1_i32 = arith.constant -1 : i32
    %36 = vector.broadcast %c-1_i32 : i32 to vector<1x384xi32>
    %37 = arith.cmpi ne, %1, %36 : vector<1x384xi32>
    %c300_i32 = arith.constant 300 : i32
    %38 = vector.broadcast %c300_i32 : i32 to vector<1x384xi32>
    %39 = arith.cmpi slt, %35, %38 : vector<1x384xi32>
    %40 = arith.andi %37, %39 : vector<1x384xi1>
    %cst_10 = arith.constant 0.000000e+00 : f32
    %41 = vector.broadcast %cst_10 : f32 to vector<1x384xf32>
    %42 = arith.select %40, %31, %41 : vector<1x384xi1>, vector<1x384xf32>
    %43 = vector.shape_cast %42 : vector<1x384xf32> to vector<1x1x384xf32>
    %cst_11 = arith.constant dense<0.000000e+00> : vector<1xf32>
    %44 = vector.multi_reduction <add>, %43, %cst_11 [1, 2] : vector<1x1x384xf32> to vector<1xf32>
    %45 = vector.shape_cast %44 : vector<1xf32> to vector<1x1x1xf32>
    %46 = vector.extract %45[0, 0, 0] : f32 from vector<1x1x1xf32>
    %cst_12 = arith.constant 1.000000e+00 : f32
    %cst_13 = arith.constant 0.000000e+00 : f32
    %47 = vector.broadcast %cst_12 : f32 to vector<1x384xf32>
    %48 = vector.broadcast %cst_13 : f32 to vector<1x384xf32>
    %49 = arith.select %40, %47, %48 : vector<1x384xi1>, vector<1x384xf32>
    %50 = vector.shape_cast %49 : vector<1x384xf32> to vector<1x1x384xf32>
    %cst_14 = arith.constant dense<0.000000e+00> : vector<1xf32>
    %51 = vector.multi_reduction <add>, %50, %cst_14 [1, 2] : vector<1x1x384xf32> to vector<1xf32>
    %52 = vector.shape_cast %51 : vector<1xf32> to vector<1x1x1xf32>
    %53 = vector.extract %52[0, 0, 0] : f32 from vector<1x1x1xf32>
    %54 = tpu.iota {dimensions = array<i32: 1>} : vector<1x128xi32>
    %c0_i32_15 = arith.constant 0 : i32
    %55 = vector.broadcast %c0_i32_15 : i32 to vector<1x128xi32>
    %56 = arith.cmpi eq, %54, %55 : vector<1x128xi32>
    %c1_i32 = arith.constant 1 : i32
    %57 = vector.broadcast %c1_i32 : i32 to vector<1x128xi32>
    %58 = arith.cmpi eq, %54, %57 : vector<1x128xi32>
    %cst_16 = arith.constant 0.000000e+00 : f32
    %59 = vector.broadcast %53 : f32 to vector<1x128xf32>
    %60 = vector.broadcast %cst_16 : f32 to vector<1x128xf32>
    %61 = arith.select %58, %59, %60 : vector<1x128xi1>, vector<1x128xf32>
    %62 = vector.broadcast %46 : f32 to vector<1x128xf32>
    %63 = arith.select %56, %62, %61 : vector<1x128xi1>, vector<1x128xf32>
    %c0_17 = arith.constant 0 : index
    %c0_18 = arith.constant 0 : index
    %64 = vector.load %arg3[%c0_17, %c0_18] : memref<1x128xf32, #tpu.memory_space<vmem>>, vector<1x128xf32>
    tpu.vector_store %arg3[%c0_17, %c0_18], %63 {strides = array<i32>} : memref<1x128xf32, #tpu.memory_space<vmem>>, vector<1x128xf32>,
    return
  }
  func.func @transform_0(%arg0: i32) -> (i32, i32) {
    %c0_i32 = arith.constant 0 : i32
    %c0_i32_0 = arith.constant 0 : i32
    return %c0_i32, %arg0 : i32, i32
  }
  func.func @transform_1(%arg0: i32) -> (i32, i32) {
    %c0_i32 = arith.constant 0 : i32
    %c0_i32_0 = arith.constant 0 : i32
    return %c0_i32, %arg0 : i32, i32
  }
  func.func @transform_2(%arg0: i32) -> (i32, i32) {
    %c0_i32 = arith.constant 0 : i32
    %c0_i32_0 = arith.constant 0 : i32
    return %arg0, %c0_i32 : i32, i32
  }
}

</mosaic_0001>

<llo_original>
// kernel: tpu_custom_call.1
$region0: #{tpu_custom_call.1}
  #allocation0 [shape = 'u32[]', space=smem, size = 0x4, offset = 0x4, fixed_abs, tag = 'smem constant byte address 0x4 - core index']
  #allocation1 [shape = 'u32[144,128]{1,0:T(1,128)}', space=vmem, size = 0x12000, scoped, tag = 'internal scratch']
  %s0 = inlined_call_operand.hbm [shape: f32[8,300], index: 0, kind: input, shape index: {}]
  %s1 = inlined_call_operand.hbm [shape: s32[1,300], index: 1, kind: input, shape index: {}]
  %s2 = inlined_call_operand.hbm [shape: f32[1,128], index: 2, kind: output, shape index: {}]
  %s3 = sld [smem:[#allocation0]]
  $region26: #{tpu_custom_call.1} parent=0
    _
  %s5 = ssub.s32 1, %s3
  %s6 = scalar_select 0, %s5, %s3
  $region1: #{tpu_custom_call.1} parent=0
    #allocation2 [shape = 'u8[12288]{0}', space=vmem, size = 0x3000, scoped, tag = 'input window, operand 0, single buffered']
    #allocation3 [shape = 's32[1]{0}', space=sflag, size = 0x4, scoped, tag = 'scoped memory for tpu_custom_call.1']
    #allocation4 [shape = 's32[1]{0}', space=sflag, size = 0x4, scoped, tag = 'scoped memory for tpu_custom_call.1']
    #allocation5 [shape = 'u8[1536]{0}', space=vmem, size = 0x800, scoped, tag = 'input window, operand 1, single buffered']
    #allocation6 [shape = 's32[1]{0}', space=sflag, size = 0x4, scoped, tag = 'scoped memory for tpu_custom_call.1']
    #allocation7 [shape = 'u8[512]{0}', space=vmem, size = 0x400, scoped, tag = 'output window, operand 0, single buffered']
    %7 = vsyncpa [#allocation3], 0
    %8 = vsyncpa [#allocation6], 0
    %9 = vsyncpa [#allocation4], 0
    // Predicated region
    $region2: #{tpu_custom_call.1} parent=1 // pred_check
      _
    $region3: #{tpu_custom_call.1} parent=1 // pred_check_branch
      %11 = sbr.rel (0) target = $region5
    $region4: #{tpu_custom_call.1} parent=1 // pred_region
      %s13 = ssub.s32 384, 384
      %14 = vsyncadd [#allocation3], %s13
      %s16 = sshll.u32 [#allocation2], 4
      %s17 = int_to_ptr.vmem [resolvable:$true] %s16
      %19 = dma.hbm_to_vmem [thread:$0]  %s0, 384, %s17, [#allocation3]
    $region5: #{tpu_custom_call.1} parent=1 // pred_fallthru
      _
    // Predicated region
    $region6: #{tpu_custom_call.1} parent=1 // pred_check
      _
    $region7: #{tpu_custom_call.1} parent=1 // pred_check_branch
      %21 = sbr.rel (0) target = $region9
    $region8: #{tpu_custom_call.1} parent=1 // pred_region
      %s23 = ssub.s32 48, 48
      %24 = vsyncadd [#allocation6], %s23
      %s26 = sshll.u32 [#allocation5], 4
      %s27 = int_to_ptr.vmem [resolvable:$true] %s26
      %29 = dma.hbm_to_vmem [thread:$0]  %s1, 48, %s27, [#allocation6]
    $region9: #{tpu_custom_call.1} parent=1 // pred_fallthru
      _
    // Predicated region
    $region10: #{tpu_custom_call.1} parent=1 // pred_check
      _
    $region11: #{tpu_custom_call.1} parent=1 // pred_check_branch
      %31 = sbr.rel (0) target = $region13
    $region12: #{tpu_custom_call.1} parent=1 // pred_region
      %32 = dma.done [#allocation3], 384
    $region13: #{tpu_custom_call.1} parent=1 // pred_fallthru
      _
    // Predicated region
    $region14: #{tpu_custom_call.1} parent=1 // pred_check
      _
    $region15: #{tpu_custom_call.1} parent=1 // pred_check_branch
      %34 = sbr.rel (0) target = $region17
    $region16: #{tpu_custom_call.1} parent=1 // pred_region
      %35 = dma.done [#allocation6], 48
    $region17: #{tpu_custom_call.1} parent=1 // pred_fallthru
      _
    %v36 = vld [vmem:[#allocation2] sm:$0xff]
    %v37 = vld [vmem:[#allocation2 + $0x8] sm:$0xff]
    %v38 = vld [vmem:[#allocation2 + $0x10] sm:$0xff]
    %v39 = vld [vmem:[#allocation5] sm:$0x7]
    %v40 = vrot.slane %v36, 4
    %v41 = vmax.f32 %v36, %v40
    %v42 = vrot.slane %v41, 2
    %v43 = vmax.f32 %v41, %v42
    %v44 = vrot.slane %v43, 1
    %v45 = vmax.f32 %v43, %v44
    %v46 = vrot.slane %v37, 4
    %v47 = vmax.f32 %v37, %v46
    %v48 = vrot.slane %v47, 2
    %v49 = vmax.f32 %v47, %v48
    %v50 = vrot.slane %v49, 1
    %v51 = vmax.f32 %v49, %v50
    %v52 = vrot.slane %v38, 4
    %v53 = vmax.f32 %v38, %v52
    %v54 = vrot.slane %v53, 2
    %v55 = vmax.f32 %v53, %v54
    %v56 = vrot.slane %v55, 1
    %v57 = vmax.f32 %v55, %v56
    %v58 = vsub.f32 %v36, %v45
    %v59 = vsub.f32 %v37, %v51
    %v60 = vsub.f32 %v38, %v57
    %v61 = vmul.f32 %v58, 1.442695
    %v62 = vpow.pop %v61
    %v63 = vmul.f32 %v59, 1.442695
    %v64 = vpow.pop %v63
    %v65 = vmul.f32 %v60, 1.442695
    %v66 = vpow.pop %v65
    %v67 = vrot.slane %v62, 4
    %v68 = vadd.f32 %v62, %v67
    %v69 = vrot.slane %v68, 2
    %v70 = vadd.f32 %v68, %v69
    %v71 = vrot.slane %v70, 1
    %v72 = vadd.f32 %v70, %v71
    %v73 = vrot.slane %v64, 4
    %v74 = vadd.f32 %v64, %v73
    %v75 = vrot.slane %v74, 2
    %v76 = vadd.f32 %v74, %v75
    %v77 = vrot.slane %v76, 1
    %v78 = vadd.f32 %v76, %v77
    %v79 = vrot.slane %v66, 4
    %v80 = vadd.f32 %v66, %v79
    %v81 = vrot.slane %v80, 2
    %v82 = vadd.f32 %v80, %v81
    %v83 = vrot.slane %v82, 1
    %v84 = vadd.f32 %v82, %v83
    %v85 = vlog2.pop %v72
    %v86 = vmul.f32 %v85, 0.6931472
    %v87 = vlog2.pop %v78
    %v88 = vmul.f32 %v87, 0.6931472
    %v89 = vlog2.pop %v84
    %v90 = vmul.f32 %v89, 0.6931472
    %v91 = vadd.f32 %v86, %v45
    %v92 = vadd.f32 %v88, %v51
    %v93 = vadd.f32 %v90, %v57
    %v94 = vlaneseq
    %v95 = vshrl.u32 %v94, 7
    %v96 = vlaneseq
    %v97 = vshrl.u32 %v96, 7
    %v98 = vsub.s32 0, %v97
    %v99 = vrot.slane %v39, %v98
    %v100 = vlaneseq
    %v101 = vshrl.u32 %v100, 7
    %v102 = vsub.s32 1, %v101
    %v103 = vrot.slane %v39, %v102
    %v104 = vlaneseq
    %v105 = vshrl.u32 %v104, 7
    %v106 = vsub.s32 2, %v105
    %v107 = vrot.slane %v39, %v106
    %vm108 = vcmp.eq.s32.totalorder %v95, %v99
    %vm109 = vcmp.eq.s32.totalorder %v95, %v103
    %vm110 = vcmp.eq.s32.totalorder %v95, %v107
    %v111 = vsel %vm108, %v36, 0.0
    %v112 = vsel %vm109, %v37, 0.0
    %v113 = vsel %vm110, %v38, 0.0
    %v114 = vrot.slane %v111, 4
    %v115 = vadd.f32 %v111, %v114
    %v116 = vrot.slane %v115, 2
    %v117 = vadd.f32 %v115, %v116
    %v118 = vrot.slane %v117, 1
    %v119 = vadd.f32 %v117, %v118
    %v120 = vrot.slane %v112, 4
    %v121 = vadd.f32 %v112, %v120
    %v122 = vrot.slane %v121, 2
    %v123 = vadd.f32 %v121, %v122
    %v124 = vrot.slane %v123, 1
    %v125 = vadd.f32 %v123, %v124
    %v126 = vrot.slane %v113, 4
    %v127 = vadd.f32 %v113, %v126
    %v128 = vrot.slane %v127, 2
    %v129 = vadd.f32 %v127, %v128
    %v130 = vrot.slane %v129, 1
    %v131 = vadd.f32 %v129, %v130
    %v132 = vsub.f32 %v91, %v119
    %v133 = vsub.f32 %v92, %v125
    %v134 = vsub.f32 %v93, %v131
    %v135 = vsub.f32 0.0, %v132
    %v136 = vsub.f32 0.0, %v133
    %v137 = vsub.f32 0.0, %v134
    %v138 = vmul.f32 %v135, 1.442695
    %v139 = vpow.pop %v138
    %v140 = vmul.f32 %v136, 1.442695
    %v141 = vpow.pop %v140
    %v142 = vmul.f32 %v137, 1.442695
    %v143 = vpow.pop %v142
    %v144 = vsub.f32 1.0, %v139
    %v145 = vsub.f32 1.0, %v141
    %v146 = vsub.f32 1.0, %v143
    %v147 = vmul.f32 %v144, %v144
    %v148 = vmul.f32 %v145, %v145
    %v149 = vmul.f32 %v146, %v146
    %vm150 = vcmp.eq.s32.totalorder %v39, 0
    %v151 = vsel %vm150, 0.25, 0.75
    %v155 = vcombine.low %v147, %v148
    %v157 = vunpack.c.l.s4 1966171168
    %v158 = vunpack.c.0.s8 %v157
    %v159 = vlaneseq
    %v160 = vshrl.u32 %v159, 7
    %v161 = vsub.s32 %v158, %v160
    %v162 = vrot.slane %v155, %v161
    %v164 = vunpack.c.l.s4 1966171168
    %v165 = vunpack.c.0.s8 %v164
    %v166 = vlaneseq
    %v167 = vshrl.u32 %v166, 7
    %v168 = vsub.s32 %v165, %v167
    %v169 = vrot.slane %v149, %v168
    %v170 = vcombine.low %v162, %v169
    %v172 = vunpack.c.l.s4 1966171168
    %v173 = vunpack.c.0.s8 %v172
    %v174 = vlaneseq
    %v175 = vshrl.u32 %v174, 7
    %v176 = vsub.s32 %v173, %v175
    %v177 = vrot.slane %v170, %v176
    %v179 = vmul.f32 %v151, %v177
    %v183 = vcombine.low %v132, %v133
    %v185 = vunpack.c.l.s4 1966171168
    %v186 = vunpack.c.0.s8 %v185
    %v187 = vlaneseq
    %v188 = vshrl.u32 %v187, 7
    %v189 = vsub.s32 %v186, %v188
    %v190 = vrot.slane %v183, %v189
    %v192 = vunpack.c.l.s4 1966171168
    %v193 = vunpack.c.0.s8 %v192
    %v194 = vlaneseq
    %v195 = vshrl.u32 %v194, 7
    %v196 = vsub.s32 %v193, %v195
    %v197 = vrot.slane %v134, %v196
    %v198 = vcombine.low %v190, %v197
    %v200 = vunpack.c.l.s4 1966171168
    %v201 = vunpack.c.0.s8 %v200
    %v202 = vlaneseq
    %v203 = vshrl.u32 %v202, 7
    %v204 = vsub.s32 %v201, %v203
    %v205 = vrot.slane %v198, %v204
    %v207 = vmul.f32 %v179, %v205
    %s208 = smul.u32 0, 384
    %v209 = vlaneseq
    %v210 = vand.u32 %v209, 127
    %v211 = vadd.s32 %v210, 128
    %v212 = vadd.s32 %v210, 256
    %v213 = vstv %s208
    %v214 = vadd.s32 %v213, %v210
    %v215 = vadd.s32 %v213, %v211
    %v216 = vadd.s32 %v213, %v212
    %vm217 = vcmp.ne.s32.totalorder %v39, 4294967295
    %vm218 = vcmp.lt.s32.totalorder %v214, 300
    %vm219 = vcmp.lt.s32.totalorder %v215, 300
    %vm220 = vcmp.lt.s32.totalorder %v216, 300
    %v221 = vsel %vm218, 1, 0
    %v222 = vsel %vm219, 1, 0
    %v223 = vsel %vm220, 1, 0
    %v224 = vcombine.low %v221, %v222
    %v226 = vunpack.c.l.s4 1966171168
    %v227 = vunpack.c.0.s8 %v226
    %v228 = vlaneseq
    %v229 = vshrl.u32 %v228, 7
    %v230 = vsub.s32 %v227, %v229
    %v231 = vrot.slane %v224, %v230
    %v233 = vunpack.c.l.s4 1966171168
    %v234 = vunpack.c.0.s8 %v233
    %v235 = vlaneseq
    %v236 = vshrl.u32 %v235, 7
    %v237 = vsub.s32 %v234, %v236
    %v238 = vrot.slane %v223, %v237
    %v239 = vcombine.low %v231, %v238
    %v241 = vunpack.c.l.s4 1966171168
    %v242 = vunpack.c.0.s8 %v241
    %v243 = vlaneseq
    %v244 = vshrl.u32 %v243, 7
    %v245 = vsub.s32 %v242, %v244
    %v246 = vrot.slane %v239, %v245
    %vm247 = vcmp.ne.s32.totalorder %v246, 0
    %vm248 = vmand %vm217, %vm247
    %v249 = vsel %vm248, %v207, 0.0
    %v251 = vlaneseq
    %v252 = vshrl.u32 %v251, 7
    %v253 = vsub.s32 0, %v252
    %v254 = vrot.slane %v249, %v253
    %v255 = vlaneseq
    %v256 = vshrl.u32 %v255, 7
    %v257 = vsub.s32 1, %v256
    %v258 = vrot.slane %v249, %v257
    %v259 = vlaneseq
    %v260 = vshrl.u32 %v259, 7
    %v261 = vsub.s32 2, %v260
    %v262 = vrot.slane %v249, %v261
    %vm266 = vcmask 1040384
    %v267 = vsel %vm266, %v254, 0.0
    %v268 = vsel %vm266, %v258, 0.0
    %v269 = vadd.f32 %v267, %v268
    %v270 = vsel %vm266, %v262, 0.0
    %v271 = vadd.f32 %v269, %v270
    %272 = vadd.xlane.f32.xlu0 %v271
    %v273 = vpop.xlane.xlu0 %272
    %v274 = vrot.slane %v273, 4
    %v275 = vadd.f32 %v273, %v274
    %v276 = vrot.slane %v275, 2
    %v277 = vadd.f32 %v275, %v276
    %v278 = vrot.slane %v277, 1
    %v279 = vadd.f32 %v277, %v278
    %s280 = vtos %v279
    %v281 = vsel %vm248, 1.0, 0.0
    %v283 = vlaneseq
    %v284 = vshrl.u32 %v283, 7
    %v285 = vsub.s32 0, %v284
    %v286 = vrot.slane %v281, %v285
    %v287 = vlaneseq
    %v288 = vshrl.u32 %v287, 7
    %v289 = vsub.s32 1, %v288
    %v290 = vrot.slane %v281, %v289
    %v291 = vlaneseq
    %v292 = vshrl.u32 %v291, 7
    %v293 = vsub.s32 2, %v292
    %v294 = vrot.slane %v281, %v293
    %v298 = vsel %vm266, %v286, 0.0
    %v299 = vsel %vm266, %v290, 0.0
    %v300 = vadd.f32 %v298, %v299
    %v301 = vsel %vm266, %v294, 0.0
    %v302 = vadd.f32 %v300, %v301
    %303 = vadd.xlane.f32.xlu0 %v302
    %v304 = vpop.xlane.xlu0 %303
    %v305 = vrot.slane %v304, 4
    %v306 = vadd.f32 %v304, %v305
    %v307 = vrot.slane %v306, 2
    %v308 = vadd.f32 %v306, %v307
    %v309 = vrot.slane %v308, 1
    %v310 = vadd.f32 %v308, %v309
    %s311 = vtos %v310
    %vm312 = vcmp.eq.s32.totalorder %v210, 0
    %vm313 = vcmp.eq.s32.totalorder %v210, 1
    %v314 = vstv %s311
    %v315 = vsel %vm313, %v314, 0.0
    %v316 = vstv %s280
    %v317 = vsel %vm312, %v316, %v315
    %318 = vst [vmem:[#allocation7] sm:$0x1] %v317
    // Predicated region
    $region18: #{tpu_custom_call.1} parent=1 // pred_check
      _
    $region19: #{tpu_custom_call.1} parent=1 // pred_check_branch
      %320 = sbr.rel (0) target = $region21
    $region20: #{tpu_custom_call.1} parent=1 // pred_region
      %s322 = ssub.s32 16, 16
      %323 = vsyncadd [#allocation4], %s322
      %s325 = sshll.u32 [#allocation7], 4
      %s326 = int_to_ptr.vmem [resolvable:$true] %s325
      %328 = dma.vmem_to_hbm [thread:$0]  %s326, 16, %s2, [#allocation4]
    $region21: #{tpu_custom_call.1} parent=1 // pred_fallthru
      _
    // Predicated region
    $region22: #{tpu_custom_call.1} parent=1 // pred_check
      _
    $region23: #{tpu_custom_call.1} parent=1 // pred_check_branch
      %330 = sbr.rel (0) target = $region25
    $region24: #{tpu_custom_call.1} parent=1 // pred_region
      %331 = dma.done [#allocation4], 16
    $region25: #{tpu_custom_call.1} parent=1 // pred_fallthru
      _
    %332 = vsyncpa [#allocation3], 1
    %333 = vsyncpa [#allocation6], 1
    %334 = vsyncpa [#allocation4], 1

</llo_original>
